<compile_context>
chip_gen: v7x
topology: tpu7x:2x2x1
jax: 0.10.0
libtpu: 0.0.40
codegen_flags: <defaults>
</compile_context>

<pallas_src>
import functools
import math

import jax
import jax.numpy as jnp
from jax import lax
from jax.experimental import pallas as pl
from jax.experimental.pallas import tpu as pltpu


def _trt_kernel(u_ref, w_ref, b_ref, o_ref, *, d, g, o_dim, use_strided):
    """One batch-row tile.

    u_ref: (Bt, G*2*D)  row r packs G batch elements; element s occupies lanes
                        [s*2D, (s+1)*2D) holding x[b].reshape(2*D), b = r*G + s
    w_ref: (2, O)       linear weight, pre-transposed to (in, out)
    b_ref: (1, O)       linear bias
    o_ref: (Bt, G*2*O)  element s occupies lanes [s*2O, (s+1)*2O) = y[b].reshape(2*O)
    """
    u = u_ref[...]                                   # (Bt, G*2D)
    half = g * d

    if use_strided:
        # Global even/odd de-interleave == per-element xr columns:
        #   ce[:, s*D + k] = u[:, s*2D + 2k]     = xr[b, k, 0]
        #   co[:, s*D + k] = u[:, s*2D + 2k + 1] = xr[b, k, 1]
        ce = u_ref[:, pl.ds(0, half, stride=2)]      # (Bt, G*D)
        co = u_ref[:, pl.ds(1, half, stride=2)]      # (Bt, G*D)
    else:
        # Fallback: exact 0/1 un-shuffle on the otherwise-idle MXU (HIGHEST
        # precision so the permutation is bit-exact).  Only used if the probe
        # finds lane-strided ref loads unsupported on this backend.
        lanes = 2 * half
        row = lax.broadcasted_iota(jnp.int32, (lanes, lanes), 0)
        col = lax.broadcasted_iota(jnp.int32, (lanes, lanes), 1)
        src = jnp.where(col < half, 2 * col, 2 * (col - half) + 1)
        perm = (row == src).astype(u.dtype)
        cc = lax.dot_general(u, perm, (((1,), (0,)), ((), ())),
                             precision=lax.Precision.HIGHEST,
                             preferred_element_type=jnp.float32)
        ce, co = cc[:, :half], cc[:, half:]

    w0 = w_ref[0:1, :]                               # (1, O)
    w1 = w_ref[1:2, :]                               # (1, O)
    bb = b_ref[...]                                  # (1, O)

    for s in range(g):                               # trace-time unrolled, g <= 64
        r0 = u[:, s * 2 * d: s * 2 * d + d]          # x[b, 0, :]
        r1 = u[:, s * 2 * d + d: (s + 1) * 2 * d]    # x[b, 1, :]
        c0 = ce[:, s * d: (s + 1) * d]               # xr[b, :, 0]
        c1 = co[:, s * d: (s + 1) * d]               # xr[b, :, 1]

        # Gram entries g[b, i, j] = <x[b, i, :], xr[b, :, j]>  (VPU mul + XLU reduce)
        g00 = jnp.sum(r0 * c0, axis=-1, keepdims=True)
        g01 = jnp.sum(r0 * c1, axis=-1, keepdims=True)
        g10 = jnp.sum(r1 * c0, axis=-1, keepdims=True)
        g11 = jnp.sum(r1 * c1, axis=-1, keepdims=True)

        base = s * 2 * o_dim                         # direct stores, no concat
        o_ref[:, base: base + o_dim] = (g00 * w0 + g01 * w1 + bb).astype(o_ref.dtype)
        o_ref[:, base + o_dim: base + 2 * o_dim] = (g10 * w0 + g11 * w1 + bb).astype(o_ref.dtype)


def _round_up(x, m):
    return ((x + m - 1) // m) * m


def _pick_group(batch, out_dim):
    """Batch elements folded per kernel row so the output HBM slab is ~128
    lanes (dense vst) and every reshape stays a free bitcast (G must divide B)."""
    target = max(1, 128 // max(1, 2 * out_dim))
    return max(1, math.gcd(batch, target))


def _tile_config(rows, in_lanes, out_lanes):
    """(block_rows, vmem_limit_bytes), generation-aware."""
    try:
        vmem = getattr(pltpu.get_tpu_info(), "vmem_capacity_bytes", None) or 64 * 2**20
    except Exception:                    # conservative (v7x-sized) default
        vmem = 64 * 2**20
    small_vmem = vmem <= 80 * 2**20      # v7x: 64 MiB / TC;  v5e / v6e: 128 MiB
    budget = (16 if small_vmem else 40) * 2**20
    vmem_limit = (32 if small_vmem else 64) * 2**20

    # double-buffered in/out blocks + ~3 input-sized in-kernel temporaries (f32)
    bytes_per_row = 4 * (2 * in_lanes + 2 * out_lanes + 3 * in_lanes)
    bt = max(8, min(budget // bytes_per_row, 8192))
    bt -= bt % 8

    # Guarantee a few grid steps so v7x's two TensorCores can both be used.
    if rows >= 64:
        bt = min(bt, _round_up(pl.cdiv(rows, 4), 8))
    elif rows >= 16:
        bt = min(bt, _round_up(pl.cdiv(rows, 2), 8))

    if rows < 8:
        bt = rows                        # full-dim block is always legal
    else:
        bt = min(bt, _round_up(rows, 8))
    return int(bt), int(vmem_limit)


@functools.partial(jax.jit,
                   static_argnames=("group", "block_rows", "vmem_limit", "use_strided"))
def _trt_forward(x, weight, bias, *, group, block_rows, vmem_limit, use_strided):
    batch, _, d = x.shape
    out_dim = weight.shape[0]
    rows = batch // group
    in_lanes = group * 2 * d
    out_lanes = group * 2 * out_dim

    u = x.reshape(rows, in_lanes)        # free memory-order reinterpretation
    w_t = weight.T                       # (2, O), tiny
    b2 = bias.reshape(1, out_dim)

    kernel = functools.partial(_trt_kernel, d=d, g=group, o_dim=out_dim,
                               use_strided=use_strided)
    out = pl.pallas_call(
        kernel,
        out_shape=jax.ShapeDtypeStruct((rows, out_lanes), x.dtype),
        grid_spec=pltpu.PrefetchScalarGridSpec(
            num_scalar_prefetch=0,
            grid=(pl.cdiv(rows, block_rows),),    # ragged last block: no jnp.pad
            in_specs=[
                pl.BlockSpec((block_rows, in_lanes), lambda i: (i, 0)),
                pl.BlockSpec((2, out_dim), lambda i: (0, 0)),
                pl.BlockSpec((1, out_dim), lambda i: (0, 0)),
            ],
            out_specs=pl.BlockSpec((block_rows, out_lanes), lambda i: (i, 0)),
        ),
        compiler_params=pltpu.CompilerParams(
            dimension_semantics=("parallel",),
            vmem_limit_bytes=vmem_limit,
        ),
    )(u, w_t, b2)
    return out.reshape(batch, 2, out_dim)  # free memory-order reinterpretation


_LANE_STRIDE_OK = None


def _lane_strided_loads_supported():
    """One-time probe: lane-strided ref loads lower on this backend and give
    the expected even/odd de-interleave."""
    global _LANE_STRIDE_OK
    if _LANE_STRIDE_OK is None:
        def probe(x_ref, o_ref):
            o_ref[...] = (x_ref[:, pl.ds(0, 128, stride=2)]
                          - 2.0 * x_ref[:, pl.ds(1, 128, stride=2)])
        try:
            xp = jnp.arange(8 * 256, dtype=jnp.float32).reshape(8, 256)
            got = pl.pallas_call(
                probe, out_shape=jax.ShapeDtypeStruct((8, 128), jnp.float32))(xp)
            want = xp[:, 0::2] - 2.0 * xp[:, 1::2]
            _LANE_STRIDE_OK = bool(jnp.allclose(got, want))
        except Exception:
            _LANE_STRIDE_OK = False
    return _LANE_STRIDE_OK


def text_representation_transformation(x, weight, bias):
    """TRT forward.

    x:      (B, 2, D) float32
    weight: (O, 2)    float32  (torch nn.Linear weight layout)
    bias:   (O,)      float32
    returns (B, 2, O) float32
    """
    batch, s, d = x.shape
    assert s == 2, "bmm(x, x.reshape(B, D, 2)) is only shape-consistent for S == 2"
    out_dim = weight.shape[0]

    group = _pick_group(batch, out_dim)
    rows = batch // group
    block_rows, vmem_limit = _tile_config(rows, group * 2 * d, group * 2 * out_dim)

    global _LANE_STRIDE_OK
    if _lane_strided_loads_supported():
        try:
            return _trt_forward(x, weight, bias, group=group, block_rows=block_rows,
                                vmem_limit=vmem_limit, use_strided=True)
        except Exception:
            # Strided lowering failed for this shape: remember and fall back to
            # the exact permutation-matmul path.
            _LANE_STRIDE_OK = False
    return _trt_forward(x, weight, bias, group=group, block_rows=block_rows,
                        vmem_limit=vmem_limit, use_strided=False)


def _reference(x, weight, bias):
    b, _, d = x.shape
    xr = x.reshape(b, d, 2)
    gm = jnp.einsum("bij,bjk->bik", x, xr, precision=lax.Precision.HIGHEST)
    return jnp.einsum("bik,ok->bio", gm, weight, precision=lax.Precision.HIGHEST) + bias


if __name__ == "__main__":
    key = jax.random.PRNGKey(0)
    k_x, k_w, k_b, k_x2 = jax.random.split(key, 4)

    # Small shapes consistent with the forward: x (B, 2, D), Linear(2 -> O).
    B, D = 2, 16
    input_size, output_size = 2, 8

    x = jax.random.normal(k_x, (B, 2, D), dtype=jnp.float32)
    bound = 1.0 / math.sqrt(input_size)           # nn.Linear-style init
    weight = jax.random.uniform(k_w, (output_size, input_size), jnp.float32, -bound, bound)
    bias = jax.random.uniform(k_b, (output_size,), jnp.float32, -bound, bound)

    out = jax.block_until_ready(text_representation_transformation(x, weight, bias))
    ref = _reference(x, weight, bias)
    assert out.shape == (B, 2, output_size)
    assert jnp.allclose(out, ref, atol=1e-4, rtol=1e-4), float(jnp.max(jnp.abs(out - ref)))

    # Larger case: grouping (G=8 -> 128-lane output rows), multi-step grid and
    # a ragged final block (375 rows, 96-row tiles) -- no pad / slice passes.
    B2 = 3000
    x2 = jax.random.normal(k_x2, (B2, 2, D), dtype=jnp.float32)
    out2 = jax.block_until_ready(text_representation_transformation(x2, weight, bias))
    ref2 = _reference(x2, weight, bias)
    assert out2.shape == (B2, 2, output_size)
    assert jnp.allclose(out2, ref2, atol=1e-4, rtol=1e-4), float(jnp.max(jnp.abs(out2 - ref2)))

    print("KERNEL_OK")
</pallas_src>

<mosaic_0001>
module attributes {stable_mosaic.version = 11 : i64} {
  func.func @probe(%arg0: memref<8x256xf32, #tpu.memory_space<vmem>>, %arg1: memref<8x128xf32, #tpu.memory_space<vmem>>) attributes {dimension_semantics = [], scalar_prefetch = 0 : i64, scratch_operands = 0 : i64, tpu.core_type = #tpu.core_type<tc>} {
    %c0 = arith.constant 0 : index
    %c0_0 = arith.constant 0 : index
    %0 = tpu.strided_load %arg0[%c0, %c0_0] {strides = array<i32: 1, 2>} : memref<8x256xf32, #tpu.memory_space<vmem>>, vector<8x128xf32>
    %c0_1 = arith.constant 0 : index
    %c1 = arith.constant 1 : index
    %1 = tpu.strided_load %arg0[%c0_1, %c1] {strides = array<i32: 1, 2>} : memref<8x256xf32, #tpu.memory_space<vmem>>, vector<8x128xf32>
    %cst = arith.constant 2.000000e+00 : f32
    %2 = vector.broadcast %cst : f32 to vector<8x128xf32>
    %3 = arith.mulf %2, %1 : vector<8x128xf32>
    %4 = arith.subf %0, %3 : vector<8x128xf32>
    %c0_2 = arith.constant 0 : index
    %c0_3 = arith.constant 0 : index
    %5 = vector.load %arg1[%c0_2, %c0_3] : memref<8x128xf32, #tpu.memory_space<vmem>>, vector<8x128xf32>
    tpu.vector_store %arg1[%c0_2, %c0_3], %4 {strides = array<i32>} : memref<8x128xf32, #tpu.memory_space<vmem>>, vector<8x128xf32>,
    return
  }
}

module attributes {stable_mosaic.version = 11 : i64} {
  func.func @_trt_kernel(%arg0: i32, %arg1: memref<1x64xf32, #tpu.memory_space<vmem>>, %arg2: memref<2x8xf32, #tpu.memory_space<vmem>>, %arg3: memref<1x8xf32, #tpu.memory_space<vmem>>, %arg4: memref<1x32xf32, #tpu.memory_space<vmem>>) attributes {dimension_semantics = [#tpu.dimension_semantics<parallel>], iteration_bounds = array<i64: 1>, scalar_prefetch = 0 : i64, scratch_operands = 0 : i64, tpu.core_type = #tpu.core_type<tc>, window_params = [{transform_indices = @transform_0, window_bounds = array<i64: 1, 64>}, {pipeline_mode = #tpu.pipeline_mode<synchronous>, transform_indices = @transform_1, window_bounds = array<i64: 2, 8>}, {pipeline_mode = #tpu.pipeline_mode<synchronous>, transform_indices = @transform_2, window_bounds = array<i64: 1, 8>}, {transform_indices = @transform_3, window_bounds = array<i64: 1, 32>}]} {
    %c0 = arith.constant 0 : index
    %c0_0 = arith.constant 0 : index
    %0 = vector.load %arg1[%c0, %c0_0] : memref<1x64xf32, #tpu.memory_space<vmem>>, vector<1x64xf32>
    %1 = tpu.iota {dimensions = array<i32: 0>} : vector<64x64xi32>
    %2 = tpu.iota {dimensions = array<i32: 1>} : vector<64x64xi32>
    %c32_i32 = arith.constant 32 : i32
    %3 = vector.broadcast %c32_i32 : i32 to vector<64x64xi32>
    %4 = arith.cmpi slt, %2, %3 : vector<64x64xi32>
    %c2_i32 = arith.constant 2 : i32
    %5 = vector.broadcast %c2_i32 : i32 to vector<64x64xi32>
    %6 = arith.muli %5, %2 : vector<64x64xi32>
    %c32_i32_1 = arith.constant 32 : i32
    %7 = vector.broadcast %c32_i32_1 : i32 to vector<64x64xi32>
    %8 = arith.subi %2, %7 : vector<64x64xi32>
    %c2_i32_2 = arith.constant 2 : i32
    %9 = vector.broadcast %c2_i32_2 : i32 to vector<64x64xi32>
    %10 = arith.muli %9, %8 : vector<64x64xi32>
    %c1_i32 = arith.constant 1 : i32
    %11 = vector.broadcast %c1_i32 : i32 to vector<64x64xi32>
    %12 = arith.addi %10, %11 : vector<64x64xi32>
    %13 = arith.select %4, %6, %12 : vector<64x64xi1>, vector<64x64xi32>
    %14 = arith.cmpi eq, %1, %13 : vector<64x64xi32>
    %15 = arith.extui %14 : vector<64x64xi1> to vector<64x64xi32>
    %16 = arith.sitofp %15 : vector<64x64xi32> to vector<64x64xf32>
    %cst = arith.constant dense<0.000000e+00> : vector<1x64xf32>
    %17 = tpu.matmul %0, %16, %cst {dimension_numbers = #tpu.dot_dimension_numbers<[1], [0], [0], [1], [0, 0, 1, 1], [], []>, precision = #tpu.contract_precision<fp32>} : vector<1x64xf32>, vector<64x64xf32>, vector<1x64xf32> -> vector<1x64xf32>
    %18 = vector.extract_strided_slice %17 {offsets = [0, 0], sizes = [1, 32], strides = [1, 1]} : vector<1x64xf32> to vector<1x32xf32>
    %19 = vector.extract_strided_slice %17 {offsets = [0, 32], sizes = [1, 32], strides = [1, 1]} : vector<1x64xf32> to vector<1x32xf32>
    %c0_3 = arith.constant 0 : index
    %c0_4 = arith.constant 0 : index
    %20 = vector.load %arg2[%c0_3, %c0_4] : memref<2x8xf32, #tpu.memory_space<vmem>>, vector<1x8xf32>
    %c1 = arith.constant 1 : index
    %c0_5 = arith.constant 0 : index
    %21 = vector.load %arg2[%c1, %c0_5] : memref<2x8xf32, #tpu.memory_space<vmem>>, vector<1x8xf32>
    %c0_6 = arith.constant 0 : index
    %c0_7 = arith.constant 0 : index
    %22 = vector.load %arg3[%c0_6, %c0_7] : memref<1x8xf32, #tpu.memory_space<vmem>>, vector<1x8xf32>
    %23 = vector.extract_strided_slice %0 {offsets = [0, 0], sizes = [1, 16], strides = [1, 1]} : vector<1x64xf32> to vector<1x16xf32>
    %24 = vector.extract_strided_slice %0 {offsets = [0, 16], sizes = [1, 16], strides = [1, 1]} : vector<1x64xf32> to vector<1x16xf32>
    %25 = vector.extract_strided_slice %18 {offsets = [0, 0], sizes = [1, 16], strides = [1, 1]} : vector<1x32xf32> to vector<1x16xf32>
    %26 = vector.extract_strided_slice %19 {offsets = [0, 0], sizes = [1, 16], strides = [1, 1]} : vector<1x32xf32> to vector<1x16xf32>
    %27 = arith.mulf %23, %25 : vector<1x16xf32>
    %cst_8 = arith.constant dense<0.000000e+00> : vector<1xf32>
    %28 = vector.multi_reduction <add>, %27, %cst_8 [1] : vector<1x16xf32> to vector<1xf32>
    %29 = vector.shape_cast %28 : vector<1xf32> to vector<1x1xf32>
    %30 = arith.mulf %23, %26 : vector<1x16xf32>
    %cst_9 = arith.constant dense<0.000000e+00> : vector<1xf32>
    %31 = vector.multi_reduction <add>, %30, %cst_9 [1] : vector<1x16xf32> to vector<1xf32>
    %32 = vector.shape_cast %31 : vector<1xf32> to vector<1x1xf32>
    %33 = arith.mulf %24, %25 : vector<1x16xf32>
    %cst_10 = arith.constant dense<0.000000e+00> : vector<1xf32>
    %34 = vector.multi_reduction <add>, %33, %cst_10 [1] : vector<1x16xf32> to vector<1xf32>
    %35 = vector.shape_cast %34 : vector<1xf32> to vector<1x1xf32>
    %36 = arith.mulf %24, %26 : vector<1x16xf32>
    %cst_11 = arith.constant dense<0.000000e+00> : vector<1xf32>
    %37 = vector.multi_reduction <add>, %36, %cst_11 [1] : vector<1x16xf32> to vector<1xf32>
    %38 = vector.shape_cast %37 : vector<1xf32> to vector<1x1xf32>
    %39 = vector.broadcast %29 : vector<1x1xf32> to vector<1x8xf32>
    %40 = arith.mulf %39, %20 : vector<1x8xf32>
    %41 = vector.broadcast %32 : vector<1x1xf32> to vector<1x8xf32>
    %42 = arith.mulf %41, %21 : vector<1x8xf32>
    %43 = arith.addf %40, %42 : vector<1x8xf32>
    %44 = arith.addf %43, %22 : vector<1x8xf32>
    %c0_12 = arith.constant 0 : index
    %c0_13 = arith.constant 0 : index
    %45 = vector.load %arg4[%c0_12, %c0_13] : memref<1x32xf32, #tpu.memory_space<vmem>>, vector<1x8xf32>
    tpu.vector_store %arg4[%c0_12, %c0_13], %44 {strides = array<i32>} : memref<1x32xf32, #tpu.memory_space<vmem>>, vector<1x8xf32>,
    %46 = vector.broadcast %35 : vector<1x1xf32> to vector<1x8xf32>
    %47 = arith.mulf %46, %20 : vector<1x8xf32>
    %48 = vector.broadcast %38 : vector<1x1xf32> to vector<1x8xf32>
    %49 = arith.mulf %48, %21 : vector<1x8xf32>
    %50 = arith.addf %47, %49 : vector<1x8xf32>
    %51 = arith.addf %50, %22 : vector<1x8xf32>
    %c0_14 = arith.constant 0 : index
    %c8 = arith.constant 8 : index
    %52 = vector.load %arg4[%c0_14, %c8] : memref<1x32xf32, #tpu.memory_space<vmem>>, vector<1x8xf32>
    tpu.vector_store %arg4[%c0_14, %c8], %51 {strides = array<i32>} : memref<1x32xf32, #tpu.memory_space<vmem>>, vector<1x8xf32>,
    %53 = vector.extract_strided_slice %0 {offsets = [0, 32], sizes = [1, 16], strides = [1, 1]} : vector<1x64xf32> to vector<1x16xf32>
    %54 = vector.extract_strided_slice %0 {offsets = [0, 48], sizes = [1, 16], strides = [1, 1]} : vector<1x64xf32> to vector<1x16xf32>
    %55 = vector.extract_strided_slice %18 {offsets = [0, 16], sizes = [1, 16], strides = [1, 1]} : vector<1x32xf32> to vector<1x16xf32>
    %56 = vector.extract_strided_slice %19 {offsets = [0, 16], sizes = [1, 16], strides = [1, 1]} : vector<1x32xf32> to vector<1x16xf32>
    %57 = arith.mulf %53, %55 : vector<1x16xf32>
    %cst_15 = arith.constant dense<0.000000e+00> : vector<1xf32>
    %58 = vector.multi_reduction <add>, %57, %cst_15 [1] : vector<1x16xf32> to vector<1xf32>
    %59 = vector.shape_cast %58 : vector<1xf32> to vector<1x1xf32>
    %60 = arith.mulf %53, %56 : vector<1x16xf32>
    %cst_16 = arith.constant dense<0.000000e+00> : vector<1xf32>
    %61 = vector.multi_reduction <add>, %60, %cst_16 [1] : vector<1x16xf32> to vector<1xf32>
    %62 = vector.shape_cast %61 : vector<1xf32> to vector<1x1xf32>
    %63 = arith.mulf %54, %55 : vector<1x16xf32>
    %cst_17 = arith.constant dense<0.000000e+00> : vector<1xf32>
    %64 = vector.multi_reduction <add>, %63, %cst_17 [1] : vector<1x16xf32> to vector<1xf32>
    %65 = vector.shape_cast %64 : vector<1xf32> to vector<1x1xf32>
    %66 = arith.mulf %54, %56 : vector<1x16xf32>
    %cst_18 = arith.constant dense<0.000000e+00> : vector<1xf32>
    %67 = vector.multi_reduction <add>, %66, %cst_18 [1] : vector<1x16xf32> to vector<1xf32>
    %68 = vector.shape_cast %67 : vector<1xf32> to vector<1x1xf32>
    %69 = vector.broadcast %59 : vector<1x1xf32> to vector<1x8xf32>
    %70 = arith.mulf %69, %20 : vector<1x8xf32>
    %71 = vector.broadcast %62 : vector<1x1xf32> to vector<1x8xf32>
    %72 = arith.mulf %71, %21 : vector<1x8xf32>
    %73 = arith.addf %70, %72 : vector<1x8xf32>
    %74 = arith.addf %73, %22 : vector<1x8xf32>
    %c0_19 = arith.constant 0 : index
    %c16 = arith.constant 16 : index
    %75 = vector.load %arg4[%c0_19, %c16] : memref<1x32xf32, #tpu.memory_space<vmem>>, vector<1x8xf32>
    tpu.vector_store %arg4[%c0_19, %c16], %74 {strides = array<i32>} : memref<1x32xf32, #tpu.memory_space<vmem>>, vector<1x8xf32>,
    %76 = vector.broadcast %65 : vector<1x1xf32> to vector<1x8xf32>
    %77 = arith.mulf %76, %20 : vector<1x8xf32>
    %78 = vector.broadcast %68 : vector<1x1xf32> to vector<1x8xf32>
    %79 = arith.mulf %78, %21 : vector<1x8xf32>
    %80 = arith.addf %77, %79 : vector<1x8xf32>
    %81 = arith.addf %80, %22 : vector<1x8xf32>
    %c0_20 = arith.constant 0 : index
    %c24 = arith.constant 24 : index
    %82 = vector.load %arg4[%c0_20, %c24] : memref<1x32xf32, #tpu.memory_space<vmem>>, vector<1x8xf32>
    tpu.vector_store %arg4[%c0_20, %c24], %81 {strides = array<i32>} : memref<1x32xf32, #tpu.memory_space<vmem>>, vector<1x8xf32>,
    return
  }
  func.func @transform_0(%arg0: i32) -> (i32, i32) {
    %c0_i32 = arith.constant 0 : i32
    %c0_i32_0 = arith.constant 0 : i32
    return %arg0, %c0_i32 : i32, i32
  }
  func.func @transform_1(%arg0: i32) -> (i32, i32) {
    %c0_i32 = arith.constant 0 : i32
    %c0_i32_0 = arith.constant 0 : i32
    %c0_i32_1 = arith.constant 0 : i32
    return %c0_i32, %c0_i32_0 : i32, i32
  }
  func.func @transform_2(%arg0: i32) -> (i32, i32) {
    %c0_i32 = arith.constant 0 : i32
    %c0_i32_0 = arith.constant 0 : i32
    %c0_i32_1 = arith.constant 0 : i32
    return %c0_i32, %c0_i32_0 : i32, i32
  }
  func.func @transform_3(%arg0: i32) -> (i32, i32) {
    %c0_i32 = arith.constant 0 : i32
    %c0_i32_0 = arith.constant 0 : i32
    return %arg0, %c0_i32 : i32, i32
  }
}

</mosaic_0001>

<llo_original>
// kernel: _trt_forward.1
$region0: #{_trt_forward.1}
  #allocation0 [shape = 'u32[]', space=smem, size = 0x4, offset = 0x4, fixed_abs, tag = 'smem constant byte address 0x4 - core index']
  #allocation1 [shape = 'u32[144,128]{1,0:T(1,128)}', space=vmem, size = 0x12000, scoped, tag = 'internal scratch']
  %s0 = inlined_call_operand.vmem [shape: f32[1,64], index: 0, kind: input, shape index: {}]
  %s1 = inlined_call_operand.vmem [shape: f32[2,8], index: 1, kind: input, shape index: {}]
  %s2 = inlined_call_operand.vmem [shape: f32[1,8], index: 2, kind: input, shape index: {}]
  %s3 = inlined_call_operand.vmem [shape: f32[1,32], index: 3, kind: output, shape index: {}]
  %s4 = sld [smem:[#allocation0]]
  $region22: #{_trt_forward.1} parent=0
    _
  %s6 = ssub.s32 1, %s4
  %s7 = scalar_select 0, %s6, %s4
  // Predicated region
  $region2: #{_trt_forward.1} parent=0 // pred_check
    _
  $region3: #{_trt_forward.1} parent=0 // pred_check_branch
    %9 = sbr.rel (0) target = $region5
  $region4: #{_trt_forward.1} parent=0 // pred_region
    _
  $region5: #{_trt_forward.1} parent=0 // pred_fallthru
    _
  // Predicated region
  $region6: #{_trt_forward.1} parent=0 // pred_check
    _
  $region7: #{_trt_forward.1} parent=0 // pred_check_branch
    %11 = sbr.rel (0) target = $region9
  $region8: #{_trt_forward.1} parent=0 // pred_region
    _
  $region9: #{_trt_forward.1} parent=0 // pred_fallthru
    _
  // Predicated region
  $region10: #{_trt_forward.1} parent=0 // pred_check
    _
  $region11: #{_trt_forward.1} parent=0 // pred_check_branch
    %13 = sbr.rel (0) target = $region13
  $region12: #{_trt_forward.1} parent=0 // pred_region
    _
  $region13: #{_trt_forward.1} parent=0 // pred_fallthru
    _
  %v14 = vld [vmem:[%s0] sm:$0x1]
  %v15 = vlaneseq
  %v16 = vshrl.u32 %v15, 7
  %v17 = vadd.s32 %v16, 8
  %v18 = vadd.s32 %v16, 16
  %v19 = vadd.s32 %v16, 24
  %v20 = vadd.s32 %v16, 32
  %v21 = vadd.s32 %v16, 40
  %v22 = vadd.s32 %v16, 48
  %v23 = vadd.s32 %v16, 56
  %v24 = vlaneseq
  %v25 = vand.u32 %v24, 127
  %vm26 = vcmp.lt.s32.totalorder %v25, 32
  %v27 = vmul.u32 %v25, 2
  %v28 = vsub.s32 %v25, 32
  %v29 = vmul.u32 %v28, 2
  %v30 = vadd.s32 %v29, 1
  %v31 = vsel %vm26, %v27, %v30
  %vm32 = vcmp.eq.s32.totalorder %v16, %v31
  %vm33 = vcmp.eq.s32.totalorder %v17, %v31
  %vm34 = vcmp.eq.s32.totalorder %v18, %v31
  %vm35 = vcmp.eq.s32.totalorder %v19, %v31
  %vm36 = vcmp.eq.s32.totalorder %v20, %v31
  %vm37 = vcmp.eq.s32.totalorder %v21, %v31
  %vm38 = vcmp.eq.s32.totalorder %v22, %v31
  %vm39 = vcmp.eq.s32.totalorder %v23, %v31
  %v40 = vsel %vm32, 1, 0
  %v41 = vsel %vm33, 1, 0
  %v42 = vsel %vm34, 1, 0
  %v43 = vsel %vm35, 1, 0
  %v44 = vsel %vm36, 1, 0
  %v45 = vsel %vm37, 1, 0
  %v46 = vsel %vm38, 1, 0
  %v47 = vsel %vm39, 1, 0
  %v48 = vcvt.s32.f32 %v40
  %v49 = vcvt.s32.f32 %v41
  %v50 = vcvt.s32.f32 %v42
  %v51 = vcvt.s32.f32 %v43
  %v52 = vcvt.s32.f32 %v44
  %v53 = vcvt.s32.f32 %v45
  %v54 = vcvt.s32.f32 %v46
  %v55 = vcvt.s32.f32 %v47
  %vm56 = vcmask 523264
  %v58 = vsel %vm56, %v14, 0
  %60 = vmatprep.subr.mxu0 0.0
  %v61 = vand.u32 %v48, 4294901760
  %62 = vmatpush1.msra.mxu0 %v61
  %63 = vmatprep.subr.mxu0 0.0
  %v64 = vand.u32 %v49, 4294901760
  %65 = vmatpush1.msra.mxu0 %v64
  %66 = vmatprep.subr.mxu0 0.0
  %v67 = vand.u32 %v50, 4294901760
  %68 = vmatpush1.msra.mxu0 %v67
  %69 = vmatprep.subr.mxu0 0.0
  %v70 = vand.u32 %v51, 4294901760
  %71 = vmatpush1.msra.mxu0 %v70
  %72 = vmatprep.subr.mxu0 0.0
  %v73 = vand.u32 %v52, 4294901760
  %74 = vmatpush1.msra.mxu0 %v73
  %75 = vmatprep.subr.mxu0 0.0
  %v76 = vand.u32 %v53, 4294901760
  %77 = vmatpush1.msra.mxu0 %v76
  %78 = vmatprep.subr.mxu0 0.0
  %v79 = vand.u32 %v54, 4294901760
  %80 = vmatpush1.msra.mxu0 %v79
  %81 = vmatprep.subr.mxu0 0.0
  %v82 = vand.u32 %v55, 4294901760
  %83 = vmatpush1.msra.mxu0 %v82
  %84 = vmatprep.subr.mxu0 0.0
  %85 = vmatpush1.msra.mxu0 0.0
  %86 = vmatprep.subr.mxu0 0.0
  %87 = vmatpush1.msra.mxu0 0.0
  %88 = vmatprep.subr.mxu0 0.0
  %89 = vmatpush1.msra.mxu0 0.0
  %90 = vmatprep.subr.mxu0 0.0
  %91 = vmatpush1.msra.mxu0 0.0
  %92 = vmatprep.subr.mxu0 0.0
  %93 = vmatpush1.msra.mxu0 0.0
  %94 = vmatprep.subr.mxu0 0.0
  %95 = vmatpush1.msra.mxu0 0.0
  %96 = vmatprep.subr.mxu0 0.0
  %97 = vmatpush1.msra.mxu0 0.0
  %98 = vmatprep.subr.mxu0 0.0
  %99 = vmatpush1.msra.mxu0 0.0
  %100 = vmatprep.subr.mxu0 0.0
  %101 = vmatpush1.msra.mxu0 0.0
  %102 = vmatprep.subr.mxu0 0.0
  %103 = vmatpush1.msra.mxu0 0.0
  %104 = vmatprep.subr.mxu0 0.0
  %105 = vmatpush1.msra.mxu0 0.0
  %106 = vmatprep.subr.mxu0 0.0
  %107 = vmatpush1.msra.mxu0 0.0
  %108 = vmatprep.subr.mxu0 0.0
  %109 = vmatpush1.msra.mxu0 0.0
  %110 = vmatprep.subr.mxu0 0.0
  %111 = vmatpush1.msra.mxu0 0.0
  %112 = vmatprep.subr.mxu0 0.0
  %113 = vmatpush1.msra.mxu0 0.0
  %114 = vmatprep.subr.mxu0 0.0
  %115 = vmatpush1.msra.mxu0 0.0
  %116 = vmatprep.subr.mxu0 0.0
  %117 = vmatpush1.msra.mxu0 0.0
  %118 = vmatprep.subr.mxu0 0.0
  %119 = vmatpush1.msra.mxu0 0.0
  %120 = vmatprep.subr.mxu0 0.0
  %121 = vmatpush1.msra.mxu0 0.0
  %122 = vmatprep.subr.mxu0 0.0
  %123 = vmatpush1.msra.mxu0 0.0
  %124 = vmatprep.subr.mxu0 0.0
  %125 = vmatpush1.msra.mxu0 0.0
  %126 = vmatprep.subr.mxu0 0.0
  %127 = vmatpush1.msra.mxu0 0.0
  %128 = vmatprep.subr.mxu0 0.0
  %129 = vmatpush1.msra.mxu0 0.0
  %130 = vmatprep.subr.mxu0 0.0
  %131 = vmatpush1.msra.mxu0 0.0
  %132 = vmatprep.mubr.f32.mxu0 0.0
  %v133 = vand.u32 %v58, 4294901760
  %v134 = vsub.f32 %v58, %v133
  %v135 = vand.u32 %v134, 4294901760
  %v136 = vsub.f32 %v134, %v135
  %v137 = vand.u32 %v136, 4294901760
  %138 = vmatmul.mubr.f32.gmra.mrb[0].mxu0 %v137
  %v139 = vpop.f32.mrb[0].mxu0
  %v140 = vadd.f32 0.0, %v139
  %v141 = vpop.f32.mrb[0].mxu0
  %142 = vdwg.mxu0
  %143 = vmatprep.subr.mxu0 0.0
  %v144 = vand.u32 %v48, 4294901760
  %v145 = vsub.f32 %v48, %v144
  %v146 = vand.u32 %v145, 4294901760
  %v147 = vsub.f32 %v145, %v146
  %v148 = vand.u32 %v147, 4294901760
  %149 = vmatpush1.msra.mxu0 %v148
  %150 = vmatprep.subr.mxu0 0.0
  %v151 = vand.u32 %v49, 4294901760
  %v152 = vsub.f32 %v49, %v151
  %v153 = vand.u32 %v152, 4294901760
  %v154 = vsub.f32 %v152, %v153
  %v155 = vand.u32 %v154, 4294901760
  %156 = vmatpush1.msra.mxu0 %v155
  %157 = vmatprep.subr.mxu0 0.0
  %v158 = vand.u32 %v50, 4294901760
  %v159 = vsub.f32 %v50, %v158
  %v160 = vand.u32 %v159, 4294901760
  %v161 = vsub.f32 %v159, %v160
  %v162 = vand.u32 %v161, 4294901760
  %163 = vmatpush1.msra.mxu0 %v162
  %164 = vmatprep.subr.mxu0 0.0
  %v165 = vand.u32 %v51, 4294901760
  %v166 = vsub.f32 %v51, %v165
  %v167 = vand.u32 %v166, 4294901760
  %v168 = vsub.f32 %v166, %v167
  %v169 = vand.u32 %v168, 4294901760
  %170 = vmatpush1.msra.mxu0 %v169
  %171 = vmatprep.subr.mxu0 0.0
  %v172 = vand.u32 %v52, 4294901760
  %v173 = vsub.f32 %v52, %v172
  %v174 = vand.u32 %v173, 4294901760
  %v175 = vsub.f32 %v173, %v174
  %v176 = vand.u32 %v175, 4294901760
  %177 = vmatpush1.msra.mxu0 %v176
  %178 = vmatprep.subr.mxu0 0.0
  %v179 = vand.u32 %v53, 4294901760
  %v180 = vsub.f32 %v53, %v179
  %v181 = vand.u32 %v180, 4294901760
  %v182 = vsub.f32 %v180, %v181
  %v183 = vand.u32 %v182, 4294901760
  %184 = vmatpush1.msra.mxu0 %v183
  %185 = vmatprep.subr.mxu0 0.0
  %v186 = vand.u32 %v54, 4294901760
  %v187 = vsub.f32 %v54, %v186
  %v188 = vand.u32 %v187, 4294901760
  %v189 = vsub.f32 %v187, %v188
  %v190 = vand.u32 %v189, 4294901760
  %191 = vmatpush1.msra.mxu0 %v190
  %192 = vmatprep.subr.mxu0 0.0
  %v193 = vand.u32 %v55, 4294901760
  %v194 = vsub.f32 %v55, %v193
  %v195 = vand.u32 %v194, 4294901760
  %v196 = vsub.f32 %v194, %v195
  %v197 = vand.u32 %v196, 4294901760
  %198 = vmatpush1.msra.mxu0 %v197
  %199 = vmatprep.subr.mxu0 0.0
  %200 = vmatpush1.msra.mxu0 0.0
  %201 = vmatprep.subr.mxu0 0.0
  %202 = vmatpush1.msra.mxu0 0.0
  %203 = vmatprep.subr.mxu0 0.0
  %204 = vmatpush1.msra.mxu0 0.0
  %205 = vmatprep.subr.mxu0 0.0
  %206 = vmatpush1.msra.mxu0 0.0
  %207 = vmatprep.subr.mxu0 0.0
  %208 = vmatpush1.msra.mxu0 0.0
  %209 = vmatprep.subr.mxu0 0.0
  %210 = vmatpush1.msra.mxu0 0.0
  %211 = vmatprep.subr.mxu0 0.0
  %212 = vmatpush1.msra.mxu0 0.0
  %213 = vmatprep.subr.mxu0 0.0
  %214 = vmatpush1.msra.mxu0 0.0
  %215 = vmatprep.subr.mxu0 0.0
  %216 = vmatpush1.msra.mxu0 0.0
  %217 = vmatprep.subr.mxu0 0.0
  %218 = vmatpush1.msra.mxu0 0.0
  %219 = vmatprep.subr.mxu0 0.0
  %220 = vmatpush1.msra.mxu0 0.0
  %221 = vmatprep.subr.mxu0 0.0
  %222 = vmatpush1.msra.mxu0 0.0
  %223 = vmatprep.subr.mxu0 0.0
  %224 = vmatpush1.msra.mxu0 0.0
  %225 = vmatprep.subr.mxu0 0.0
  %226 = vmatpush1.msra.mxu0 0.0
  %227 = vmatprep.subr.mxu0 0.0
  %228 = vmatpush1.msra.mxu0 0.0
  %229 = vmatprep.subr.mxu0 0.0
  %230 = vmatpush1.msra.mxu0 0.0
  %231 = vmatprep.subr.mxu0 0.0
  %232 = vmatpush1.msra.mxu0 0.0
  %233 = vmatprep.subr.mxu0 0.0
  %234 = vmatpush1.msra.mxu0 0.0
  %235 = vmatprep.subr.mxu0 0.0
  %236 = vmatpush1.msra.mxu0 0.0
  %237 = vmatprep.subr.mxu0 0.0
  %238 = vmatpush1.msra.mxu0 0.0
  %239 = vmatprep.subr.mxu0 0.0
  %240 = vmatpush1.msra.mxu0 0.0
  %241 = vmatprep.subr.mxu0 0.0
  %242 = vmatpush1.msra.mxu0 0.0
  %243 = vmatprep.subr.mxu0 0.0
  %244 = vmatpush1.msra.mxu0 0.0
  %245 = vmatprep.subr.mxu0 0.0
  %246 = vmatpush1.msra.mxu0 0.0
  %247 = vmatprep.mubr.f32.mxu0 0.0
  %v248 = vand.u32 %v58, 4294901760
  %249 = vmatmul.mubr.f32.gmra.mrb[0].mxu0 %v248
  %v250 = vpop.f32.mrb[0].mxu0
  %v251 = vadd.f32 %v140, %v250
  %v252 = vpop.f32.mrb[0].mxu0
  %253 = vdwg.mxu0
  %254 = vmatprep.subr.mxu0 0.0
  %v255 = vand.u32 %v48, 4294901760
  %v256 = vsub.f32 %v48, %v255
  %257 = vmatpush1.msra.mxu0 %v256
  %258 = vmatprep.subr.mxu0 0.0
  %v259 = vand.u32 %v49, 4294901760
  %v260 = vsub.f32 %v49, %v259
  %261 = vmatpush1.msra.mxu0 %v260
  %262 = vmatprep.subr.mxu0 0.0
  %v263 = vand.u32 %v50, 4294901760
  %v264 = vsub.f32 %v50, %v263
  %265 = vmatpush1.msra.mxu0 %v264
  %266 = vmatprep.subr.mxu0 0.0
  %v267 = vand.u32 %v51, 4294901760
  %v268 = vsub.f32 %v51, %v267
  %269 = vmatpush1.msra.mxu0 %v268
  %270 = vmatprep.subr.mxu0 0.0
  %v271 = vand.u32 %v52, 4294901760
  %v272 = vsub.f32 %v52, %v271
  %273 = vmatpush1.msra.mxu0 %v272
  %274 = vmatprep.subr.mxu0 0.0
  %v275 = vand.u32 %v53, 4294901760
  %v276 = vsub.f32 %v53, %v275
  %277 = vmatpush1.msra.mxu0 %v276
  %278 = vmatprep.subr.mxu0 0.0
  %v279 = vand.u32 %v54, 4294901760
  %v280 = vsub.f32 %v54, %v279
  %281 = vmatpush1.msra.mxu0 %v280
  %282 = vmatprep.subr.mxu0 0.0
  %v283 = vand.u32 %v55, 4294901760
  %v284 = vsub.f32 %v55, %v283
  %285 = vmatpush1.msra.mxu0 %v284
  %286 = vmatprep.subr.mxu0 0.0
  %287 = vmatpush1.msra.mxu0 0.0
  %288 = vmatprep.subr.mxu0 0.0
  %289 = vmatpush1.msra.mxu0 0.0
  %290 = vmatprep.subr.mxu0 0.0
  %291 = vmatpush1.msra.mxu0 0.0
  %292 = vmatprep.subr.mxu0 0.0
  %293 = vmatpush1.msra.mxu0 0.0
  %294 = vmatprep.subr.mxu0 0.0
  %295 = vmatpush1.msra.mxu0 0.0
  %296 = vmatprep.subr.mxu0 0.0
  %297 = vmatpush1.msra.mxu0 0.0
  %298 = vmatprep.subr.mxu0 0.0
  %299 = vmatpush1.msra.mxu0 0.0
  %300 = vmatprep.subr.mxu0 0.0
  %301 = vmatpush1.msra.mxu0 0.0
  %302 = vmatprep.subr.mxu0 0.0
  %303 = vmatpush1.msra.mxu0 0.0
  %304 = vmatprep.subr.mxu0 0.0
  %305 = vmatpush1.msra.mxu0 0.0
  %306 = vmatprep.subr.mxu0 0.0
  %307 = vmatpush1.msra.mxu0 0.0
  %308 = vmatprep.subr.mxu0 0.0
  %309 = vmatpush1.msra.mxu0 0.0
  %310 = vmatprep.subr.mxu0 0.0
  %311 = vmatpush1.msra.mxu0 0.0
  %312 = vmatprep.subr.mxu0 0.0
  %313 = vmatpush1.msra.mxu0 0.0
  %314 = vmatprep.subr.mxu0 0.0
  %315 = vmatpush1.msra.mxu0 0.0
  %316 = vmatprep.subr.mxu0 0.0
  %317 = vmatpush1.msra.mxu0 0.0
  %318 = vmatprep.subr.mxu0 0.0
  %319 = vmatpush1.msra.mxu0 0.0
  %320 = vmatprep.subr.mxu0 0.0
  %321 = vmatpush1.msra.mxu0 0.0
  %322 = vmatprep.subr.mxu0 0.0
  %323 = vmatpush1.msra.mxu0 0.0
  %324 = vmatprep.subr.mxu0 0.0
  %325 = vmatpush1.msra.mxu0 0.0
  %326 = vmatprep.subr.mxu0 0.0
  %327 = vmatpush1.msra.mxu0 0.0
  %328 = vmatprep.subr.mxu0 0.0
  %329 = vmatpush1.msra.mxu0 0.0
  %330 = vmatprep.subr.mxu0 0.0
  %331 = vmatpush1.msra.mxu0 0.0
  %332 = vmatprep.subr.mxu0 0.0
  %333 = vmatpush1.msra.mxu0 0.0
  %334 = vmatprep.mubr.f32.mxu0 0.0
  %v335 = vand.u32 %v58, 4294901760
  %v336 = vsub.f32 %v58, %v335
  %337 = vmatmul.mubr.f32.gmra.mrb[0].mxu0 %v336
  %v338 = vpop.f32.mrb[0].mxu0
  %v339 = vadd.f32 %v251, %v338
  %v340 = vpop.f32.mrb[0].mxu0
  %341 = vdwg.mxu0
  %342 = vmatprep.subr.mxu0 0.0
  %v343 = vand.u32 %v48, 4294901760
  %344 = vmatpush1.msra.mxu0 %v343
  %345 = vmatprep.subr.mxu0 0.0
  %v346 = vand.u32 %v49, 4294901760
  %347 = vmatpush1.msra.mxu0 %v346
  %348 = vmatprep.subr.mxu0 0.0
  %v349 = vand.u32 %v50, 4294901760
  %350 = vmatpush1.msra.mxu0 %v349
  %351 = vmatprep.subr.mxu0 0.0
  %v352 = vand.u32 %v51, 4294901760
  %353 = vmatpush1.msra.mxu0 %v352
  %354 = vmatprep.subr.mxu0 0.0
  %v355 = vand.u32 %v52, 4294901760
  %356 = vmatpush1.msra.mxu0 %v355
  %357 = vmatprep.subr.mxu0 0.0
  %v358 = vand.u32 %v53, 4294901760
  %359 = vmatpush1.msra.mxu0 %v358
  %360 = vmatprep.subr.mxu0 0.0
  %v361 = vand.u32 %v54, 4294901760
  %362 = vmatpush1.msra.mxu0 %v361
  %363 = vmatprep.subr.mxu0 0.0
  %v364 = vand.u32 %v55, 4294901760
  %365 = vmatpush1.msra.mxu0 %v364
  %366 = vmatprep.subr.mxu0 0.0
  %367 = vmatpush1.msra.mxu0 0.0
  %368 = vmatprep.subr.mxu0 0.0
  %369 = vmatpush1.msra.mxu0 0.0
  %370 = vmatprep.subr.mxu0 0.0
  %371 = vmatpush1.msra.mxu0 0.0
  %372 = vmatprep.subr.mxu0 0.0
  %373 = vmatpush1.msra.mxu0 0.0
  %374 = vmatprep.subr.mxu0 0.0
  %375 = vmatpush1.msra.mxu0 0.0
  %376 = vmatprep.subr.mxu0 0.0
  %377 = vmatpush1.msra.mxu0 0.0
  %378 = vmatprep.subr.mxu0 0.0
  %379 = vmatpush1.msra.mxu0 0.0
  %380 = vmatprep.subr.mxu0 0.0
  %381 = vmatpush1.msra.mxu0 0.0
  %382 = vmatprep.subr.mxu0 0.0
  %383 = vmatpush1.msra.mxu0 0.0
  %384 = vmatprep.subr.mxu0 0.0
  %385 = vmatpush1.msra.mxu0 0.0
  %386 = vmatprep.subr.mxu0 0.0
  %387 = vmatpush1.msra.mxu0 0.0
  %388 = vmatprep.subr.mxu0 0.0
  %389 = vmatpush1.msra.mxu0 0.0
  %390 = vmatprep.subr.mxu0 0.0
  %391 = vmatpush1.msra.mxu0 0.0
  %392 = vmatprep.subr.mxu0 0.0
  %393 = vmatpush1.msra.mxu0 0.0
  %394 = vmatprep.subr.mxu0 0.0
  %395 = vmatpush1.msra.mxu0 0.0
  %396 = vmatprep.subr.mxu0 0.0
  %397 = vmatpush1.msra.mxu0 0.0
  %398 = vmatprep.subr.mxu0 0.0
  %399 = vmatpush1.msra.mxu0 0.0
  %400 = vmatprep.subr.mxu0 0.0
  %401 = vmatpush1.msra.mxu0 0.0
  %402 = vmatprep.subr.mxu0 0.0
  %403 = vmatpush1.msra.mxu0 0.0
  %404 = vmatprep.subr.mxu0 0.0
  %405 = vmatpush1.msra.mxu0 0.0
  %406 = vmatprep.subr.mxu0 0.0
  %407 = vmatpush1.msra.mxu0 0.0
  %408 = vmatprep.subr.mxu0 0.0
  %409 = vmatpush1.msra.mxu0 0.0
  %410 = vmatprep.subr.mxu0 0.0
  %411 = vmatpush1.msra.mxu0 0.0
  %412 = vmatprep.subr.mxu0 0.0
  %413 = vmatpush1.msra.mxu0 0.0
  %414 = vmatprep.mubr.f32.mxu0 0.0
  %v415 = vand.u32 %v58, 4294901760
  %v416 = vsub.f32 %v58, %v415
  %v417 = vand.u32 %v416, 4294901760
  %418 = vmatmul.mubr.f32.gmra.mrb[0].mxu0 %v417
  %v419 = vpop.f32.mrb[0].mxu0
  %v420 = vadd.f32 %v339, %v419
  %v421 = vpop.f32.mrb[0].mxu0
  %422 = vdwg.mxu0
  %423 = vmatprep.subr.mxu0 0.0
  %v424 = vand.u32 %v48, 4294901760
  %v425 = vsub.f32 %v48, %v424
  %v426 = vand.u32 %v425, 4294901760
  %427 = vmatpush1.msra.mxu0 %v426
  %428 = vmatprep.subr.mxu0 0.0
  %v429 = vand.u32 %v49, 4294901760
  %v430 = vsub.f32 %v49, %v429
  %v431 = vand.u32 %v430, 4294901760
  %432 = vmatpush1.msra.mxu0 %v431
  %433 = vmatprep.subr.mxu0 0.0
  %v434 = vand.u32 %v50, 4294901760
  %v435 = vsub.f32 %v50, %v434
  %v436 = vand.u32 %v435, 4294901760
  %437 = vmatpush1.msra.mxu0 %v436
  %438 = vmatprep.subr.mxu0 0.0
  %v439 = vand.u32 %v51, 4294901760
  %v440 = vsub.f32 %v51, %v439
  %v441 = vand.u32 %v440, 4294901760
  %442 = vmatpush1.msra.mxu0 %v441
  %443 = vmatprep.subr.mxu0 0.0
  %v444 = vand.u32 %v52, 4294901760
  %v445 = vsub.f32 %v52, %v444
  %v446 = vand.u32 %v445, 4294901760
  %447 = vmatpush1.msra.mxu0 %v446
  %448 = vmatprep.subr.mxu0 0.0
  %v449 = vand.u32 %v53, 4294901760
  %v450 = vsub.f32 %v53, %v449
  %v451 = vand.u32 %v450, 4294901760
  %452 = vmatpush1.msra.mxu0 %v451
  %453 = vmatprep.subr.mxu0 0.0
  %v454 = vand.u32 %v54, 4294901760
  %v455 = vsub.f32 %v54, %v454
  %v456 = vand.u32 %v455, 4294901760
  %457 = vmatpush1.msra.mxu0 %v456
  %458 = vmatprep.subr.mxu0 0.0
  %v459 = vand.u32 %v55, 4294901760
  %v460 = vsub.f32 %v55, %v459
  %v461 = vand.u32 %v460, 4294901760
  %462 = vmatpush1.msra.mxu0 %v461
  %463 = vmatprep.subr.mxu0 0.0
  %464 = vmatpush1.msra.mxu0 0.0
  %465 = vmatprep.subr.mxu0 0.0
  %466 = vmatpush1.msra.mxu0 0.0
  %467 = vmatprep.subr.mxu0 0.0
  %468 = vmatpush1.msra.mxu0 0.0
  %469 = vmatprep.subr.mxu0 0.0
  %470 = vmatpush1.msra.mxu0 0.0
  %471 = vmatprep.subr.mxu0 0.0
  %472 = vmatpush1.msra.mxu0 0.0
  %473 = vmatprep.subr.mxu0 0.0
  %474 = vmatpush1.msra.mxu0 0.0
  %475 = vmatprep.subr.mxu0 0.0
  %476 = vmatpush1.msra.mxu0 0.0
  %477 = vmatprep.subr.mxu0 0.0
  %478 = vmatpush1.msra.mxu0 0.0
  %479 = vmatprep.subr.mxu0 0.0
  %480 = vmatpush1.msra.mxu0 0.0
  %481 = vmatprep.subr.mxu0 0.0
  %482 = vmatpush1.msra.mxu0 0.0
  %483 = vmatprep.subr.mxu0 0.0
  %484 = vmatpush1.msra.mxu0 0.0
  %485 = vmatprep.subr.mxu0 0.0
  %486 = vmatpush1.msra.mxu0 0.0
  %487 = vmatprep.subr.mxu0 0.0
  %488 = vmatpush1.msra.mxu0 0.0
  %489 = vmatprep.subr.mxu0 0.0
  %490 = vmatpush1.msra.mxu0 0.0
  %491 = vmatprep.subr.mxu0 0.0
  %492 = vmatpush1.msra.mxu0 0.0
  %493 = vmatprep.subr.mxu0 0.0
  %494 = vmatpush1.msra.mxu0 0.0
  %495 = vmatprep.subr.mxu0 0.0
  %496 = vmatpush1.msra.mxu0 0.0
  %497 = vmatprep.subr.mxu0 0.0
  %498 = vmatpush1.msra.mxu0 0.0
  %499 = vmatprep.subr.mxu0 0.0
  %500 = vmatpush1.msra.mxu0 0.0
  %501 = vmatprep.subr.mxu0 0.0
  %502 = vmatpush1.msra.mxu0 0.0
  %503 = vmatprep.subr.mxu0 0.0
  %504 = vmatpush1.msra.mxu0 0.0
  %505 = vmatprep.subr.mxu0 0.0
  %506 = vmatpush1.msra.mxu0 0.0
  %507 = vmatprep.subr.mxu0 0.0
  %508 = vmatpush1.msra.mxu0 0.0
  %509 = vmatprep.subr.mxu0 0.0
  %510 = vmatpush1.msra.mxu0 0.0
  %511 = vmatprep.mubr.f32.mxu0 0.0
  %v512 = vand.u32 %v58, 4294901760
  %513 = vmatmul.mubr.f32.gmra.mrb[0].mxu0 %v512
  %v514 = vpop.f32.mrb[0].mxu0
  %v515 = vadd.f32 %v420, %v514
  %v516 = vpop.f32.mrb[0].mxu0
  %517 = vdwg.mxu0
  %518 = vmatprep.subr.mxu0 0.0
  %v519 = vand.u32 %v48, 4294901760
  %520 = vmatpush1.msra.mxu0 %v519
  %521 = vmatprep.subr.mxu0 0.0
  %v522 = vand.u32 %v49, 4294901760
  %523 = vmatpush1.msra.mxu0 %v522
  %524 = vmatprep.subr.mxu0 0.0
  %v525 = vand.u32 %v50, 4294901760
  %526 = vmatpush1.msra.mxu0 %v525
  %527 = vmatprep.subr.mxu0 0.0
  %v528 = vand.u32 %v51, 4294901760
  %529 = vmatpush1.msra.mxu0 %v528
  %530 = vmatprep.subr.mxu0 0.0
  %v531 = vand.u32 %v52, 4294901760
  %532 = vmatpush1.msra.mxu0 %v531
  %533 = vmatprep.subr.mxu0 0.0
  %v534 = vand.u32 %v53, 4294901760
  %535 = vmatpush1.msra.mxu0 %v534
  %536 = vmatprep.subr.mxu0 0.0
  %v537 = vand.u32 %v54, 4294901760
  %538 = vmatpush1.msra.mxu0 %v537
  %539 = vmatprep.subr.mxu0 0.0
  %v540 = vand.u32 %v55, 4294901760
  %541 = vmatpush1.msra.mxu0 %v540
  %542 = vmatprep.subr.mxu0 0.0
  %543 = vmatpush1.msra.mxu0 0.0
  %544 = vmatprep.subr.mxu0 0.0
  %545 = vmatpush1.msra.mxu0 0.0
  %546 = vmatprep.subr.mxu0 0.0
  %547 = vmatpush1.msra.mxu0 0.0
  %548 = vmatprep.subr.mxu0 0.0
  %549 = vmatpush1.msra.mxu0 0.0
  %550 = vmatprep.subr.mxu0 0.0
  %551 = vmatpush1.msra.mxu0 0.0
  %552 = vmatprep.subr.mxu0 0.0
  %553 = vmatpush1.msra.mxu0 0.0
  %554 = vmatprep.subr.mxu0 0.0
  %555 = vmatpush1.msra.mxu0 0.0
  %556 = vmatprep.subr.mxu0 0.0
  %557 = vmatpush1.msra.mxu0 0.0
  %558 = vmatprep.subr.mxu0 0.0
  %559 = vmatpush1.msra.mxu0 0.0
  %560 = vmatprep.subr.mxu0 0.0
  %561 = vmatpush1.msra.mxu0 0.0
  %562 = vmatprep.subr.mxu0 0.0
  %563 = vmatpush1.msra.mxu0 0.0
  %564 = vmatprep.subr.mxu0 0.0
  %565 = vmatpush1.msra.mxu0 0.0
  %566 = vmatprep.subr.mxu0 0.0
  %567 = vmatpush1.msra.mxu0 0.0
  %568 = vmatprep.subr.mxu0 0.0
  %569 = vmatpush1.msra.mxu0 0.0
  %570 = vmatprep.subr.mxu0 0.0
  %571 = vmatpush1.msra.mxu0 0.0
  %572 = vmatprep.subr.mxu0 0.0
  %573 = vmatpush1.msra.mxu0 0.0
  %574 = vmatprep.subr.mxu0 0.0
  %575 = vmatpush1.msra.mxu0 0.0
  %576 = vmatprep.subr.mxu0 0.0
  %577 = vmatpush1.msra.mxu0 0.0
  %578 = vmatprep.subr.mxu0 0.0
  %579 = vmatpush1.msra.mxu0 0.0
  %580 = vmatprep.subr.mxu0 0.0
  %581 = vmatpush1.msra.mxu0 0.0
  %582 = vmatprep.subr.mxu0 0.0
  %583 = vmatpush1.msra.mxu0 0.0
  %584 = vmatprep.subr.mxu0 0.0
  %585 = vmatpush1.msra.mxu0 0.0
  %586 = vmatprep.subr.mxu0 0.0
  %587 = vmatpush1.msra.mxu0 0.0
  %588 = vmatprep.subr.mxu0 0.0
  %589 = vmatpush1.msra.mxu0 0.0
  %590 = vmatprep.mubr.f32.mxu0 0.0
  %v591 = vand.u32 %v58, 4294901760
  %592 = vmatmul.mubr.f32.gmra.mrb[0].mxu0 %v591
  %v593 = vpop.f32.mrb[0].mxu0
  %v594 = vadd.f32 %v515, %v593
  %v595 = vpop.f32.mrb[0].mxu0
  %596 = vdwg.mxu0
  %v597 = vld [vmem:[%s1] sm:$0x1]
  %v598 = vld [vmem:[%s1 + $0x1] sm:$0x1]
  %v599 = vld [vmem:[%s2] sm:$0x1]
  %v600 = vmul.f32 %v14, %v594
  %vm601 = vcmask 122880
  %v602 = vsel %vm601, %v600, 0.0
  %603 = vadd.xlane.f32.xlu0 %v602
  %v604 = vpop.xlane.xlu0 %603
  %v607 = vunpack.c.l.s4 1966171168
  %v608 = vunpack.c.0.s8 %v607
  %v609 = vlaneseq
  %v610 = vshrl.u32 %v609, 7
  %v611 = vsub.s32 %v608, %v610
  %v612 = vrot.slane %v594, %v611
  %v614 = vunpack.c.l.s4 1966171168
  %v615 = vunpack.c.0.s8 %v614
  %v616 = vlaneseq
  %v617 = vshrl.u32 %v616, 7
  %v618 = vsub.s32 %v615, %v617
  %v619 = vrot.slane %v612, %v618
  %620 = vrot.lane.b32.xlu0 %v619, 96
  %v621 = vpop.permute.xlu0 %620
  %v623 = vmul.f32 %v14, %v621
  %v624 = vsel %vm601, %v623, 0.0
  %625 = vadd.xlane.f32.xlu0 %v624
  %v626 = vpop.xlane.xlu0 %625
  %627 = vrot.lane.b32.xlu0 %v619, 16
  %v628 = vpop.permute.xlu0 %627
  %v630 = vmul.f32 %v14, %v628
  %v632 = vlaneseq
  %v633 = vshrl.u32 %v632, 7
  %v634 = vsub.s32 0, %v633
  %v635 = vrot.slane %v630, %v634
  %636 = vrot.lane.b32.xlu0 %v635, 112
  %v637 = vpop.permute.xlu0 %636
  %v639 = vsel %vm601, %v637, 0.0
  %640 = vadd.xlane.f32.xlu0 %v639
  %v641 = vpop.xlane.xlu0 %640
  %642 = vrot.lane.b32.xlu0 %v619, 112
  %v643 = vpop.permute.xlu0 %642
  %v645 = vmul.f32 %v14, %v643
  %v647 = vlaneseq
  %v648 = vshrl.u32 %v647, 7
  %v649 = vsub.s32 0, %v648
  %v650 = vrot.slane %v645, %v649
  %651 = vrot.lane.b32.xlu0 %v650, 112
  %v652 = vpop.permute.xlu0 %651
  %v654 = vsel %vm601, %v652, 0.0
  %655 = vadd.xlane.f32.xlu0 %v654
  %v656 = vpop.xlane.xlu0 %655
  %v657 = vmul.f32 %v604, %v597
  %v658 = vmul.f32 %v626, %v598
  %v659 = vadd.f32 %v657, %v658
  %v660 = vadd.f32 %v659, %v599
  %vm661 = vcmask 57344
  %662 = vst.msk [vmem:[%s3] sm:$0x1] %vm661, %v660
  %v663 = vmul.f32 %v641, %v597
  %v664 = vmul.f32 %v656, %v598
  %v665 = vadd.f32 %v663, %v664
  %v666 = vadd.f32 %v665, %v599
  %668 = vrot.lane.b32.xlu0 %v666, 8
  %v669 = vpop.permute.xlu0 %668
  %vm671 = vcmask 122944
  %672 = vst.msk [vmem:[%s3] sm:$0x1] %vm671, %v669
  %673 = vrot.lane.b32.xlu0 %v635, 96
  %v674 = vpop.permute.xlu0 %673
  %v676 = vsel %vm601, %v674, 0.0
  %677 = vadd.xlane.f32.xlu0 %v676
  %v678 = vpop.xlane.xlu0 %677
  %679 = vrot.lane.b32.xlu0 %v650, 96
  %v680 = vpop.permute.xlu0 %679
  %v682 = vsel %vm601, %v680, 0.0
  %683 = vadd.xlane.f32.xlu0 %v682
  %v684 = vpop.xlane.xlu0 %683
  %685 = vrot.lane.b32.xlu0 %v619, 32
  %v686 = vpop.permute.xlu0 %685
  %v688 = vmul.f32 %v14, %v686
  %v690 = vlaneseq
  %v691 = vshrl.u32 %v690, 7
  %v692 = vsub.s32 0, %v691
  %v693 = vrot.slane %v688, %v692
  %694 = vrot.lane.b32.xlu0 %v693, 80
  %v695 = vpop.permute.xlu0 %694
  %v697 = vsel %vm601, %v695, 0.0
  %698 = vadd.xlane.f32.xlu0 %v697
  %v699 = vpop.xlane.xlu0 %698
  %v701 = vlaneseq
  %v702 = vshrl.u32 %v701, 7
  %v703 = vsub.s32 0, %v702
  %v704 = vrot.slane %v600, %v703
  %705 = vrot.lane.b32.xlu0 %v704, 80
  %v706 = vpop.permute.xlu0 %705
  %v708 = vsel %vm601, %v706, 0.0
  %709 = vadd.xlane.f32.xlu0 %v708
  %v710 = vpop.xlane.xlu0 %709
  %v711 = vmul.f32 %v678, %v597
  %v712 = vmul.f32 %v684, %v598
  %v713 = vadd.f32 %v711, %v712
  %v714 = vadd.f32 %v713, %v599
  %716 = vrot.lane.b32.xlu0 %v714, 16
  %v717 = vpop.permute.xlu0 %716
  %vm719 = vcmask 188544
  %720 = vst.msk [vmem:[%s3] sm:$0x1] %vm719, %v717
  %v721 = vmul.f32 %v699, %v597
  %v722 = vmul.f32 %v710, %v598
  %v723 = vadd.f32 %v721, %v722
  %v724 = vadd.f32 %v723, %v599
  %726 = vrot.lane.b32.xlu0 %v724, 24
  %v727 = vpop.permute.xlu0 %726
  %vm729 = vcmask 254144
  %730 = vst.msk [vmem:[%s3] sm:$0x1] %vm729, %v727
  // Predicated region
  $region14: #{_trt_forward.1} parent=0 // pred_check
    _
  $region15: #{_trt_forward.1} parent=0 // pred_check_branch
    %732 = sbr.rel (0) target = $region17
  $region16: #{_trt_forward.1} parent=0 // pred_region
    _
  $region17: #{_trt_forward.1} parent=0 // pred_fallthru
    _
  // Predicated region
  $region18: #{_trt_forward.1} parent=0 // pred_check
    _
  $region19: #{_trt_forward.1} parent=0 // pred_check_branch
    %734 = sbr.rel (0) target = $region21
  $region20: #{_trt_forward.1} parent=0 // pred_region
    _
  $region21: #{_trt_forward.1} parent=0 // pred_fallthru
    _

</llo_original>
